<compile_context>
chip_gen: v6e
topology: v6e:2x2x1
jax: 0.10.0
libtpu: 0.0.40
codegen_flags: <defaults>
</compile_context>

<pallas_src>
import functools

import jax
import jax.numpy as jnp
from jax import lax
from jax.experimental import pallas as pl
from jax.experimental.pallas import tpu as pltpu

_LANES = 128
_SLAB = 8 * _LANES              # 1024 elements = one (8, 128) f32 vreg tile
_TILE_R_TARGET = 4096           # rows per grid step: 4096*128*4B = 2 MiB / f32 buffer
_CHUNK_R_TARGET = 64            # rows per inner accumulation chunk (8 f32 vregs/input)


def _wdist_kernel(real_ref, fake_ref, out_ref, acc_diff, acc_sq, *,
                  n_elems, drift, valid_rows, tile_r, chunk_rows,
                  tiles_per_core, needs_mask):
    c = pl.program_id(0)          # core split index ("parallel")
    i = pl.program_id(1)          # tile index within this split ("arbitrary")

    @pl.when(i == 0)
    def _init():
        acc_diff[...] = jnp.zeros_like(acc_diff)
        acc_sq[...] = jnp.zeros_like(acc_sq)

    num_chunks = tile_r // chunk_rows
    unroll = min(num_chunks, 8)

    def chunk_body(masked, tile_row_start):
        def body(k, carry):
            ad, asq = carry
            start = pl.multiple_of(k * chunk_rows, chunk_rows)
            r = real_ref[pl.ds(start, chunk_rows), :].astype(jnp.float32)
            f = fake_ref[pl.ds(start, chunk_rows), :].astype(jnp.float32)
            if masked:
                # Select (not multiply) so garbage past the array end cannot
                # propagate NaN/Inf.  Mask built at (chunk, 1) and broadcast.
                row = lax.broadcasted_iota(jnp.int32, (chunk_rows, 1), 0)
                keep = (tile_row_start + start + row) < valid_rows
                r = jnp.where(keep, r, 0.0)
                f = jnp.where(keep, f, 0.0)
            # Pure VPU vreg adds into (8, 128) accumulators; no cross-lane
            # reduction here.
            ad = ad + (f - r).reshape(-1, 8, _LANES).sum(axis=0)
            asq = asq + (r * r).reshape(-1, 8, _LANES).sum(axis=0)
            return ad, asq
        return body

    def run(masked, tile_row_start=0):
        ad, asq = lax.fori_loop(0, num_chunks, chunk_body(masked, tile_row_start),
                                (acc_diff[...], acc_sq[...]), unroll=unroll)
        acc_diff[...] = ad
        acc_sq[...] = asq

    if not needs_mask:
        run(False)                       # fast path: no masking code emitted
    else:
        tile_row_start = (c * tiles_per_core + i) * tile_r
        is_full = (tile_row_start + tile_r) <= valid_rows

        @pl.when(is_full)
        def _interior_tile():            # hot path: unmasked
            run(False)

        @pl.when(jnp.logical_not(is_full))
        def _boundary_tile():            # boundary or clamped duplicate tile
            run(True, tile_row_start)

    # Final cross-lane/sublane reduction + scaling, once per split.
    @pl.when(i == pl.num_programs(1) - 1)
    def _finalize():
        sum_diff = jnp.sum(acc_diff[...])
        sum_sq = jnp.sum(acc_sq[...])
        out_ref[0, 0] = ((sum_diff + jnp.float32(drift) * sum_sq)
                         * jnp.float32(1.0 / n_elems))


def _num_core_splits():
    """2-way grid split only where the 'parallel' axis maps to real extra
    TensorCores (v7x: 2 TC/chip; megacore v4/v5p).  On 1-TC chips (v5e/v6e)
    the split is pure overhead (extra clamped tile + masking), so use 1."""
    try:
        kind = jax.devices()[0].device_kind.lower()
    except Exception:
        return 1
    if "7" in kind or "v4" in kind or "v5p" in kind:
        return 2
    return 1


def _pick_chunk_rows(tile_r):
    for c in (_CHUNK_R_TARGET, 32, 16, 8):
        if tile_r % c == 0:
            return c
    return 8  # unreachable: tile_r is always a multiple of 8


def wasserstein_distance(real_data, fake_data, drift=0.001):
    assert real_data.shape == fake_data.shape, "real/fake shapes must match"

    real_flat = real_data.reshape(-1)
    fake_flat = fake_data.reshape(-1)
    n = int(real_flat.shape[0])
    n_main = (n // _SLAB) * _SLAB
    inv_n = jnp.float32(1.0 / n)

    # Main slab: zero-copy reshape of the leading multiple-of-1024 elements,
    # kept in native dtype (bf16 stays bf16 in HBM).
    # TODO(synk): for ragged n (n % 1024 != 0) XLA may materialize a copy of
    # the prefix slice feeding the custom call; only affects odd-sized inputs.
    if n_main > 0:
        rows = n_main // _LANES
        real2d = real_flat[:n_main].reshape(rows, _LANES)
        fake2d = fake_flat[:n_main].reshape(rows, _LANES)
    else:
        rows = 8
        real2d = jnp.zeros((rows, _LANES), dtype=real_data.dtype)
        fake2d = jnp.zeros((rows, _LANES), dtype=fake_data.dtype)

    tile_r = min(_TILE_R_TARGET, rows)                 # multiple of 8
    chunk_rows = _pick_chunk_rows(tile_r)
    total_tiles = pl.cdiv(rows, tile_r)
    splits = max(1, min(_num_core_splits(), total_tiles))
    tiles_per_core = pl.cdiv(total_tiles, splits)
    needs_mask = (splits * tiles_per_core * tile_r) != rows

    kernel = functools.partial(
        _wdist_kernel,
        n_elems=n, drift=float(drift), valid_rows=rows,
        tile_r=tile_r, chunk_rows=chunk_rows,
        tiles_per_core=tiles_per_core, needs_mask=needs_mask)

    def main_map(c, i):
        # Clamp to the last valid tile; fully out-of-range logical tiles take
        # the masked path and contribute exactly zero.
        return (jnp.minimum(c * tiles_per_core + i, total_tiles - 1), 0)

    itemsize = jnp.dtype(real_data.dtype).itemsize
    buffered_bytes = 2 * 2 * tile_r * _LANES * itemsize + 2 * 8 * _LANES * 4
    vmem_limit = int(min(32 * 1024 * 1024, max(8 * 1024 * 1024, 2 * buffered_bytes)))

    partials = pl.pallas_call(
        kernel,
        out_shape=jax.ShapeDtypeStruct((splits, 1), jnp.float32),
        grid_spec=pltpu.PrefetchScalarGridSpec(
            num_scalar_prefetch=0,
            grid=(splits, tiles_per_core),
            in_specs=[
                pl.BlockSpec((tile_r, _LANES), main_map),   # real main slab
                pl.BlockSpec((tile_r, _LANES), main_map),   # fake main slab
            ],
            out_specs=pl.BlockSpec((1, 1), lambda c, i: (c, 0),
                                   memory_space=pltpu.SMEM),
            scratch_shapes=[
                pltpu.VMEM((8, _LANES), jnp.float32),   # acc for (fake - real)
                pltpu.VMEM((8, _LANES), jnp.float32),   # acc for real**2
            ],
        ),
        compiler_params=pltpu.CompilerParams(
            dimension_semantics=("parallel", "arbitrary"),
            vmem_limit_bytes=vmem_limit,
        ),
        cost_estimate=pl.CostEstimate(
            flops=4 * n,
            transcendentals=0,
            bytes_accessed=2 * n_main * itemsize + 8,
        ),
    )(real2d, fake2d)

    loss = jnp.sum(partials)   # combine per-split partials (linear in sums)

    # Fold the <1024-element ragged tail with tiny jnp ops (cheaper than two
    # extra double-buffered kernel inputs).
    if n_main < n:
        rt = real_flat[n_main:].astype(jnp.float32)
        ft = fake_flat[n_main:].astype(jnp.float32)
        loss = loss + (jnp.sum(ft - rt)
                       + jnp.float32(drift) * jnp.sum(rt * rt)) * inv_n

    return loss


if __name__ == "__main__":
    key = jax.random.PRNGKey(0)
    k_real, k_fake, k1, k2, k3, k4, k5, k6 = jax.random.split(key, 8)
    drift = 0.001

    def ref_loss(r, f):
        r32 = r.astype(jnp.float32)
        f32 = f.astype(jnp.float32)
        return jnp.mean(f32) - jnp.mean(r32) + drift * jnp.mean(r32 ** 2)

    # 1) Primary small NCHW example (GAN critic inputs), divisible fast path.
    real = jax.random.normal(k_real, (2, 4, 16, 16), dtype=jnp.float32)
    fake = jax.random.normal(k_fake, (2, 4, 16, 16), dtype=jnp.float32)
    loss = wasserstein_distance(real, fake, drift)
    jax.block_until_ready(loss)
    ref = ref_loss(real, fake)
    assert jnp.allclose(loss, ref, atol=1e-5, rtol=1e-5), (loss, ref)

    # 2) Non-divisible element count: exercises the wrapper-side tail fold.
    real_odd = jax.random.normal(k1, (2, 3, 5, 7), dtype=jnp.float32)
    fake_odd = jax.random.normal(k2, (2, 3, 5, 7), dtype=jnp.float32)
    loss_odd = wasserstein_distance(real_odd, fake_odd, drift)
    jax.block_until_ready(loss_odd)
    ref_odd = ref_loss(real_odd, fake_odd)
    assert jnp.allclose(loss_odd, ref_odd, atol=1e-5, rtol=1e-5), (loss_odd, ref_odd)

    # 3) Larger bf16 input: native-dtype DMA, multi-tile accumulation and
    #    (on v7x) the 2-way core split across real TensorCores.
    real_big = jax.random.normal(k3, (8, 8, 128, 128), dtype=jnp.bfloat16)
    fake_big = jax.random.normal(k4, (8, 8, 128, 128), dtype=jnp.bfloat16)
    loss_big = wasserstein_distance(real_big, fake_big, drift)
    jax.block_until_ready(loss_big)
    ref_big = ref_loss(real_big, fake_big)
    assert jnp.allclose(loss_big, ref_big, atol=3e-5, rtol=1e-4), (loss_big, ref_big)

    # 4) rows not a multiple of the tile: exercises the gated boundary-mask
    #    path (interior tiles stay on the unmasked fast path).
    real_rag = jax.random.normal(k5, (5, 8, 128, 128), dtype=jnp.float32)
    fake_rag = jax.random.normal(k6, (5, 8, 128, 128), dtype=jnp.float32)
    loss_rag = wasserstein_distance(real_rag, fake_rag, drift)
    jax.block_until_ready(loss_rag)
    ref_rag = ref_loss(real_rag, fake_rag)
    assert jnp.allclose(loss_rag, ref_rag, atol=3e-5, rtol=1e-4), (loss_rag, ref_rag)

    print("KERNEL_OK")
</pallas_src>

<mosaic_0001>
module attributes {stable_mosaic.version = 11 : i64} {
  func.func @_wdist_kernel(%arg0: i32, %arg1: i32, %arg2: memref<16x128xf32, #tpu.memory_space<vmem>>, %arg3: memref<16x128xf32, #tpu.memory_space<vmem>>, %arg4: memref<1x1xf32, #tpu.memory_space<smem>>, %arg5: memref<8x128xf32, #tpu.memory_space<vmem>>, %arg6: memref<8x128xf32, #tpu.memory_space<vmem>>) attributes {dimension_semantics = [#tpu.dimension_semantics<parallel>, #tpu.dimension_semantics<arbitrary>], iteration_bounds = array<i64: 1, 1>, scalar_prefetch = 0 : i64, scratch_operands = 2 : i64, tpu.core_type = #tpu.core_type<tc>, window_params = [{transform_indices = @transform_0, window_bounds = array<i64: 16, 128>}, {transform_indices = @transform_1, window_bounds = array<i64: 16, 128>}, {transform_indices = @transform_2, window_bounds = array<i64: 1, 1>}]} {
    %c0_i32 = arith.constant 0 : i32
    %0 = arith.cmpi eq, %arg1, %c0_i32 : i32
    %1 = arith.extui %0 : i1 to i32
    %c0_i32_0 = arith.constant 0 : i32
    %2 = arith.cmpi ne, %1, %c0_i32_0 : i32
    scf.if %2 {
      %cst_14 = arith.constant 0.000000e+00 : f32
      %24 = vector.broadcast %cst_14 : f32 to vector<8x128xf32>
      %c0_15 = arith.constant 0 : index
      %c0_16 = arith.constant 0 : index
      %25 = vector.load %arg5[%c0_15, %c0_16] : memref<8x128xf32, #tpu.memory_space<vmem>>, vector<8x128xf32>
      tpu.vector_store %arg5[%c0_15, %c0_16], %24 {strides = array<i32>} : memref<8x128xf32, #tpu.memory_space<vmem>>, vector<8x128xf32>,
      %cst_17 = arith.constant 0.000000e+00 : f32
      %26 = vector.broadcast %cst_17 : f32 to vector<8x128xf32>
      %c0_18 = arith.constant 0 : index
      %c0_19 = arith.constant 0 : index
      %27 = vector.load %arg6[%c0_18, %c0_19] : memref<8x128xf32, #tpu.memory_space<vmem>>, vector<8x128xf32>
      tpu.vector_store %arg6[%c0_18, %c0_19], %26 {strides = array<i32>} : memref<8x128xf32, #tpu.memory_space<vmem>>, vector<8x128xf32>,
    } else {
    }
    %c0 = arith.constant 0 : index
    %c0_1 = arith.constant 0 : index
    %3 = vector.load %arg5[%c0, %c0_1] : memref<8x128xf32, #tpu.memory_space<vmem>>, vector<8x128xf32>
    %c0_2 = arith.constant 0 : index
    %c0_3 = arith.constant 0 : index
    %4 = vector.load %arg6[%c0_2, %c0_3] : memref<8x128xf32, #tpu.memory_space<vmem>>, vector<8x128xf32>
    %c0_i32_4 = arith.constant 0 : i32
    %c16_i32 = arith.constant 16 : i32
    %5 = arith.muli %c0_i32_4, %c16_i32 : i32
    %6 = tpu.assume_multiple %5, 16 : i32
    %7 = arith.index_cast %6 : i32 to index
    %c0_5 = arith.constant 0 : index
    %8 = vector.load %arg2[%7, %c0_5] : memref<16x128xf32, #tpu.memory_space<vmem>>, vector<16x128xf32>
    %9 = arith.index_cast %6 : i32 to index
    %c0_6 = arith.constant 0 : index
    %10 = vector.load %arg3[%9, %c0_6] : memref<16x128xf32, #tpu.memory_space<vmem>>, vector<16x128xf32>
    %11 = arith.subf %10, %8 : vector<16x128xf32>
    %12 = vector.shape_cast %11 : vector<16x128xf32> to vector<2x8x128xf32>
    %cst = arith.constant dense<0.000000e+00> : vector<8x128xf32>
    %13 = vector.multi_reduction <add>, %12, %cst [0] : vector<2x8x128xf32> to vector<8x128xf32>
    %14 = arith.addf %3, %13 : vector<8x128xf32>
    %15 = arith.mulf %8, %8 : vector<16x128xf32>
    %16 = vector.shape_cast %15 : vector<16x128xf32> to vector<2x8x128xf32>
    %cst_7 = arith.constant dense<0.000000e+00> : vector<8x128xf32>
    %17 = vector.multi_reduction <add>, %16, %cst_7 [0] : vector<2x8x128xf32> to vector<8x128xf32>
    %18 = arith.addf %4, %17 : vector<8x128xf32>
    %c1_i32 = arith.constant 1 : i32
    %c0_8 = arith.constant 0 : index
    %c0_9 = arith.constant 0 : index
    %19 = vector.load %arg5[%c0_8, %c0_9] : memref<8x128xf32, #tpu.memory_space<vmem>>, vector<8x128xf32>
    tpu.vector_store %arg5[%c0_8, %c0_9], %14 {strides = array<i32>} : memref<8x128xf32, #tpu.memory_space<vmem>>, vector<8x128xf32>,
    %c0_10 = arith.constant 0 : index
    %c0_11 = arith.constant 0 : index
    %20 = vector.load %arg6[%c0_10, %c0_11] : memref<8x128xf32, #tpu.memory_space<vmem>>, vector<8x128xf32>
    tpu.vector_store %arg6[%c0_10, %c0_11], %18 {strides = array<i32>} : memref<8x128xf32, #tpu.memory_space<vmem>>, vector<8x128xf32>,
    %c0_i32_12 = arith.constant 0 : i32
    %21 = arith.cmpi eq, %arg1, %c0_i32_12 : i32
    %22 = arith.extui %21 : i1 to i32
    %c0_i32_13 = arith.constant 0 : i32
    %23 = arith.cmpi ne, %22, %c0_i32_13 : i32
    scf.if %23 {
      %c0_14 = arith.constant 0 : index
      %c0_15 = arith.constant 0 : index
      %24 = vector.load %arg5[%c0_14, %c0_15] : memref<8x128xf32, #tpu.memory_space<vmem>>, vector<8x128xf32>
      %25 = vector.shape_cast %24 : vector<8x128xf32> to vector<1x8x128xf32>
      %cst_16 = arith.constant dense<0.000000e+00> : vector<1xf32>
      %26 = vector.multi_reduction <add>, %25, %cst_16 [1, 2] : vector<1x8x128xf32> to vector<1xf32>
      %27 = vector.shape_cast %26 : vector<1xf32> to vector<1x1x1xf32>
      %28 = vector.extract %27[0, 0, 0] : f32 from vector<1x1x1xf32>
      %c0_17 = arith.constant 0 : index
      %c0_18 = arith.constant 0 : index
      %29 = vector.load %arg6[%c0_17, %c0_18] : memref<8x128xf32, #tpu.memory_space<vmem>>, vector<8x128xf32>
      %30 = vector.shape_cast %29 : vector<8x128xf32> to vector<1x8x128xf32>
      %cst_19 = arith.constant dense<0.000000e+00> : vector<1xf32>
      %31 = vector.multi_reduction <add>, %30, %cst_19 [1, 2] : vector<1x8x128xf32> to vector<1xf32>
      %32 = vector.shape_cast %31 : vector<1xf32> to vector<1x1x1xf32>
      %33 = vector.extract %32[0, 0, 0] : f32 from vector<1x1x1xf32>
      %cst_20 = arith.constant 1.000000e-03 : f32
      %34 = arith.mulf %cst_20, %33 : f32
      %35 = arith.addf %28, %34 : f32
      %cst_21 = arith.constant 4.8828125E-4 : f32
      %36 = arith.mulf %35, %cst_21 : f32
      %c0_22 = arith.constant 0 : index
      %c0_23 = arith.constant 0 : index
      %37 = memref.load %arg4[%c0_22, %c0_23] : memref<1x1xf32, #tpu.memory_space<smem>>
      memref.store %36, %arg4[%c0_22, %c0_23] : memref<1x1xf32, #tpu.memory_space<smem>>
    } else {
    }
    return
  }
  func.func @transform_0(%arg0: i32, %arg1: i32) -> (i32, i32) {
    %c1_i32 = arith.constant 1 : i32
    %0 = arith.muli %arg0, %c1_i32 : i32
    %1 = arith.addi %0, %arg1 : i32
    %c0_i32 = arith.constant 0 : i32
    %2 = arith.minsi %1, %c0_i32 : i32
    %c0_i32_0 = arith.constant 0 : i32
    %c0_i32_1 = arith.constant 0 : i32
    return %2, %c0_i32_0 : i32, i32
  }
  func.func @transform_1(%arg0: i32, %arg1: i32) -> (i32, i32) {
    %c1_i32 = arith.constant 1 : i32
    %0 = arith.muli %arg0, %c1_i32 : i32
    %1 = arith.addi %0, %arg1 : i32
    %c0_i32 = arith.constant 0 : i32
    %2 = arith.minsi %1, %c0_i32 : i32
    %c0_i32_0 = arith.constant 0 : i32
    %c0_i32_1 = arith.constant 0 : i32
    return %2, %c0_i32_0 : i32, i32
  }
  func.func @transform_2(%arg0: i32, %arg1: i32) -> (i32, i32) {
    %c0_i32 = arith.constant 0 : i32
    %c0_i32_0 = arith.constant 0 : i32
    return %arg0, %c0_i32 : i32, i32
  }
}

</mosaic_0001>

<llo_original>
// kernel: tpu_custom_call.1
$region0: #{tpu_custom_call.1}
  #allocation0 [shape = 'u32[]', space=smem, size = 0x4, offset = 0x4, fixed_abs, tag = 'smem constant byte address 0x4 - core index']
  #allocation1 [shape = 'u32[144,128]{1,0:T(1,128)}', space=vmem, size = 0x12000, scoped, tag = 'internal scratch']
  #allocation2 [shape = 'f32[8,128]{1,0:T(8,128)}', space=vmem, size = 0x1000, scoped, tag = 'scratch operand']
  #allocation3 [shape = 'f32[8,128]{1,0:T(8,128)}', space=vmem, size = 0x1000, scoped, tag = 'scratch operand']
  %s0 = inlined_call_operand.hbm [shape: f32[16,128], index: 0, kind: input, shape index: {}]
  %s1 = inlined_call_operand.hbm [shape: f32[16,128], index: 1, kind: input, shape index: {}]
  %s2 = inlined_call_operand.hbm [shape: f32[1,1], index: 2, kind: output, shape index: {}]
  %s3 = sld [smem:[#allocation0]]
  $region34: #{tpu_custom_call.1} parent=0
    _
  %s5 = ssub.s32 1, %s3
  %s6 = scalar_select 0, %s5, %s3
  $region1: #{tpu_custom_call.1} parent=0
    #allocation4 [shape = 'u8[8192]{0}', space=vmem, size = 0x2000, scoped, tag = 'input window, operand 0, single buffered']
    #allocation5 [shape = 's32[1]{0}', space=sflag, size = 0x4, scoped, tag = 'scoped memory for tpu_custom_call.1']
    #allocation6 [shape = 's32[1]{0}', space=sflag, size = 0x4, scoped, tag = 'scoped memory for tpu_custom_call.1']
    #allocation7 [shape = 'u8[8192]{0}', space=vmem, size = 0x2000, scoped, tag = 'input window, operand 1, single buffered']
    #allocation8 [shape = 's32[1]{0}', space=sflag, size = 0x4, scoped, tag = 'scoped memory for tpu_custom_call.1']
    #allocation9 [shape = 'u8[512]{0}', space=smem, size = 0x200, scoped, tag = 'output window, operand 0, single buffered']
    %7 = vsyncpa [#allocation5], 0
    %8 = vsyncpa [#allocation8], 0
    %9 = vsyncpa [#allocation6], 0
    // Predicated region
    $region2: #{tpu_custom_call.1} parent=1 // pred_check
      _
    $region3: #{tpu_custom_call.1} parent=1 // pred_check_branch
      %11 = sbr.rel (0) target = $region5
    $region4: #{tpu_custom_call.1} parent=1 // pred_region
      %s12 = sadd.s32 0, 0
      %p13 = scmp.lt.s32.totalorder %s12, 0
      %s14 = scalar_select %p13, %s12, 0
      %s15 = smul.u32 2, %s14
      %s17 = ssub.s32 256, 256
      %18 = vsyncadd [#allocation5], %s17
      %s19 = smul.addr %s15, 128
      %s20 = scalar_lea.hbm %s0, %s19
      %s21 = sshll.u32 [#allocation4], 4
      %s22 = int_to_ptr.vmem [resolvable:$true] %s21
      %27 = dma.hbm_to_vmem [thread:$0]  %s20, 256, %s22, [#allocation5], 128, 128, 8
    $region5: #{tpu_custom_call.1} parent=1 // pred_fallthru
      _
    // Predicated region
    $region6: #{tpu_custom_call.1} parent=1 // pred_check
      _
    $region7: #{tpu_custom_call.1} parent=1 // pred_check_branch
      %29 = sbr.rel (0) target = $region9
    $region8: #{tpu_custom_call.1} parent=1 // pred_region
      %s30 = sadd.s32 0, 0
      %p31 = scmp.lt.s32.totalorder %s30, 0
      %s32 = scalar_select %p31, %s30, 0
      %s33 = smul.u32 2, %s32
      %s35 = ssub.s32 256, 256
      %36 = vsyncadd [#allocation8], %s35
      %s37 = smul.addr %s33, 128
      %s38 = scalar_lea.hbm %s1, %s37
      %s39 = sshll.u32 [#allocation7], 4
      %s40 = int_to_ptr.vmem [resolvable:$true] %s39
      %45 = dma.hbm_to_vmem [thread:$0]  %s38, 256, %s40, [#allocation8], 128, 128, 8
    $region9: #{tpu_custom_call.1} parent=1 // pred_fallthru
      _
    // Predicated region
    $region10: #{tpu_custom_call.1} parent=1 // pred_check
      _
    $region11: #{tpu_custom_call.1} parent=1 // pred_check_branch
      %47 = sbr.rel (0) target = $region13
    $region12: #{tpu_custom_call.1} parent=1 // pred_region
      %48 = dma.done [#allocation5], 256
    $region13: #{tpu_custom_call.1} parent=1 // pred_fallthru
      _
    // Predicated region
    $region14: #{tpu_custom_call.1} parent=1 // pred_check
      _
    $region15: #{tpu_custom_call.1} parent=1 // pred_check_branch
      %50 = sbr.rel (0) target = $region17
    $region16: #{tpu_custom_call.1} parent=1 // pred_region
      %51 = dma.done [#allocation8], 256
    $region17: #{tpu_custom_call.1} parent=1 // pred_fallthru
      _
    %s52 = sadd.s32 0, 0
    %p53 = scmp.lt.s32.totalorder %s52, 0
    %s54 = scalar_select %p53, %s52, 0
    %s55 = smul.u32 2, %s54
    %s56 = sadd.s32 0, 0
    %p57 = scmp.lt.s32.totalorder %s56, 0
    %s58 = scalar_select %p57, %s56, 0
    %s59 = smul.u32 2, %s58
    %p60 = scmp.eq.s32.totalorder 0, 0
    // Predicated region
    $region18: #{tpu_custom_call.1} parent=1 // pred_check
      %p61 = pneg %p60
    $region19: #{tpu_custom_call.1} parent=1 // pred_check_branch
      %63 = sbr.rel (%p61) target = $region21
    $region20: #{tpu_custom_call.1} parent=1 // pred_region
      %64 = vst [vmem:[#allocation2] sm:$0xff] 0.0
      %65 = vst [vmem:[#allocation3] sm:$0xff] 0.0
    $region21: #{tpu_custom_call.1} parent=1 // pred_fallthru
      _
    %v66 = vld [vmem:[#allocation2] sm:$0xff]
    %v67 = vld [vmem:[#allocation3] sm:$0xff]
    %v68 = vld [vmem:[#allocation4] sm:$0xff]
    %v69 = vld [vmem:[#allocation4 + $0x8] sm:$0xff]
    %v70 = vld [vmem:[#allocation7] sm:$0xff]
    %v71 = vld [vmem:[#allocation7 + $0x8] sm:$0xff]
    %v72 = vsub.f32 %v70, %v68
    %v73 = vsub.f32 %v71, %v69
    %v74 = vadd.f32 %v72, %v73
    %v75 = vadd.f32 %v66, %v74
    %v76 = vmul.f32 %v68, %v68
    %v77 = vmul.f32 %v69, %v69
    %v78 = vadd.f32 %v76, %v77
    %v79 = vadd.f32 %v67, %v78
    %80 = vst [vmem:[#allocation2] sm:$0xff] %v75
    %81 = vst [vmem:[#allocation3] sm:$0xff] %v79
    // Predicated region
    $region22: #{tpu_custom_call.1} parent=1 // pred_check
      %p82 = pneg %p60
    $region23: #{tpu_custom_call.1} parent=1 // pred_check_branch
      %84 = sbr.rel (%p82) target = $region25
    $region24: #{tpu_custom_call.1} parent=1 // pred_region
      %v85 = vld [vmem:[#allocation2] sm:$0xff]
      %86 = vadd.xlane.f32.xlu0 %v85
      %v87 = vpop.xlane.xlu0 %86
      %v88 = vrot.slane %v87, 4
      %v89 = vadd.f32 %v87, %v88
      %v90 = vrot.slane %v89, 2
      %v91 = vadd.f32 %v89, %v90
      %v92 = vrot.slane %v91, 1
      %v93 = vadd.f32 %v91, %v92
      %s94 = vtos %v93
      %v95 = vld [vmem:[#allocation3] sm:$0xff]
      %96 = vadd.xlane.f32.xlu0 %v95
      %v97 = vpop.xlane.xlu0 %96
      %v98 = vrot.slane %v97, 4
      %v99 = vadd.f32 %v97, %v98
      %v100 = vrot.slane %v99, 2
      %v101 = vadd.f32 %v99, %v100
      %v102 = vrot.slane %v101, 1
      %v103 = vadd.f32 %v101, %v102
      %s104 = vtos %v103
      %s105 = smul.f32 %s104, 0.001
      %s106 = sadd.f32 %s94, %s105
      %s107 = smul.f32 %s106, 0.00048828125
      %s108 = scalar_lea.smem [#allocation9], 0
      %109 = sst [smem:[%s108]] %s107
    $region25: #{tpu_custom_call.1} parent=1 // pred_fallthru
      _
    // Predicated region
    $region26: #{tpu_custom_call.1} parent=1 // pred_check
      _
    $region27: #{tpu_custom_call.1} parent=1 // pred_check_branch
      %111 = sbr.rel (0) target = $region29
    $region28: #{tpu_custom_call.1} parent=1 // pred_region
      %s113 = ssub.s32 16, 16
      %114 = vsyncadd [#allocation6], %s113
      %117 = dma.smem_to_hbm [#allocation9], 16, %s2, [#allocation6]
    $region29: #{tpu_custom_call.1} parent=1 // pred_fallthru
      _
    // Predicated region
    $region30: #{tpu_custom_call.1} parent=1 // pred_check
      _
    $region31: #{tpu_custom_call.1} parent=1 // pred_check_branch
      %119 = sbr.rel (0) target = $region33
    $region32: #{tpu_custom_call.1} parent=1 // pred_region
      %120 = dma.done [#allocation6], 16
    $region33: #{tpu_custom_call.1} parent=1 // pred_fallthru
      _
    %121 = sfence
    %122 = vsyncpa [#allocation5], 1
    %123 = vsyncpa [#allocation8], 1
    %124 = vsyncpa [#allocation6], 1

</llo_original>
